<compile_context>
chip_gen: v6e
topology: v6e:2x2x1
jax: 0.10.0
libtpu: 0.0.40
codegen_flags: <defaults>
</compile_context>

<pallas_src>
import functools

import jax
import jax.numpy as jnp
from jax.experimental import pallas as pl
from jax.experimental.pallas import tpu as pltpu

GEM_EPS = 1e-6
BN_EPS = 1e-5
NORM_EPS = 1e-12


def iscnet_head_kernel(x_ref, w_ref, offset_ref, o_ref, *, p):
    # x_ref: (TB, HW, C) channels-last feature tile (C lane-dense)
    # w_ref: (C, F) = (fc.weight.T * bn_scale), bf16
    # offset_ref: (1, F) folded BatchNorm offset; o_ref: (TB, F)
    x = x_ref[...].astype(jnp.float32)
    xc = jnp.maximum(x, GEM_EPS)                    # clamp(min=eps)
    # --- GeM: elementwise power (specialized for static p), mean over HW ---
    if p == 4.0:                                    # eval_p: pure VPU multiplies
        x2 = xc * xc
        xp = x2 * x2
    elif p == 3.0:
        xp = xc * xc * xc
    elif p == 2.0:
        xp = xc * xc
    else:
        xp = jnp.power(xc, p)
    pooled = jnp.mean(xp, axis=1)                   # (TB, C): sublane reduce, lane-dense
    if p == 4.0:
        g = jnp.sqrt(jnp.sqrt(pooled))              # ^(1/4)
    elif p == 2.0:
        g = jnp.sqrt(pooled)
    else:
        g = jnp.power(pooled, 1.0 / p)
    # --- fc (Linear, bias=False) with BN scale folded into W: bf16 MXU matmul ---
    y = jnp.dot(g.astype(jnp.bfloat16), w_ref[...],
                preferred_element_type=jnp.float32)
    # --- remaining BatchNorm1d (eval) offset ---
    y = y + offset_ref[...]
    # --- F.normalize: L2 over feature dim, norm clamped at 1e-12 ---
    norm = jnp.sqrt(jnp.sum(y * y, axis=-1, keepdims=True))
    y = y / jnp.maximum(norm, NORM_EPS)
    o_ref[...] = y.astype(o_ref.dtype)


def _round_up(x, m):
    return ((x + m - 1) // m) * m


def _padded_tile_bytes(tb, hw, c, itemsize):
    """VMEM bytes of a (tb, hw, c) tile after lane/sublane padding."""
    sub = {4: 8, 2: 16, 1: 32}.get(itemsize, 8)
    return tb * _round_up(hw, sub) * _round_up(c, 128) * itemsize


def _vmem_capacity_bytes():
    try:
        info = pltpu.get_tpu_info()
        cap = getattr(info, "vmem_capacity_bytes", None)
        if cap:
            return int(cap)
    except Exception:
        pass
    return 64 * 1024 * 1024  # conservative (v7x-sized) fallback


def _choose_tb(batch, hw, c, itemsize, input_budget, tb_cap):
    """Largest batch tile whose double-buffered (padded) input fits the budget."""
    per_row = _padded_tile_bytes(1, hw, c, itemsize)
    tb = input_budget // max(1, 2 * per_row)
    tb = max(8, min(tb_cap, tb))
    tb = (tb // 8) * 8                        # keep output stores sublane-dense
    # TODO(synk): for very large C*HW feature maps even TB=8 can exceed the
    # budget; a second "arbitrary" grid axis over HW with a (TB, C) accumulator
    # would bound VMEM — not needed at these shapes.
    if batch <= tb:
        if batch >= 16:
            # Split into >= 2 tiles so the "parallel" axis can use both v7x TCs.
            return _round_up(pl.cdiv(batch, 2), 8)
        return batch                          # single block == full batch dim (allowed)
    return tb


def iscnet_head(x_bhwc, fc_weight, bn_gamma, bn_beta, bn_mean, bn_var, *, p=4.0):
    """x_bhwc: backbone feature map, channels-last (B, H, W, C).
    fc_weight: (fc_dim, C) (PyTorch Linear layout)."""
    B, H, W, C = x_bhwc.shape
    fc_dim = fc_weight.shape[0]
    HW = H * W

    # Pure reshape (no HBM transpose copy); keep the input dtype as-is (bf16 ok).
    x = x_bhwc.reshape(B, HW, C)

    # Fold BatchNorm (eval, running stats) into the fc weight + a single offset.
    inv_std = jax.lax.rsqrt(bn_var.astype(jnp.float32) + BN_EPS)
    scale = bn_gamma.astype(jnp.float32) * inv_std                         # (F,)
    offset = (bn_beta.astype(jnp.float32)
              - bn_mean.astype(jnp.float32) * scale).reshape(1, fc_dim)
    # fc weight pre-transposed to (C, F), BN scale folded in, stored bf16 for MXU.
    w_t = (jnp.transpose(fc_weight).astype(jnp.float32)
           * scale[None, :]).astype(jnp.bfloat16)

    # Generation-aware tiling budgets.
    cap = _vmem_capacity_bytes()
    if cap >= 100 * 1024 * 1024:          # v5e / v6e: 128 MiB physical VMEM
        input_budget = 48 * 1024 * 1024
        tb_cap = 512
        vmem_cap = 64 * 1024 * 1024
    else:                                  # v7x: 64 MiB physical per TC
        input_budget = 20 * 1024 * 1024
        tb_cap = 256
        vmem_cap = 32 * 1024 * 1024

    TB = _choose_tb(B, HW, C, x.dtype.itemsize, input_budget, tb_cap)
    B_pad = pl.cdiv(B, TB) * TB
    if B_pad != B:
        x = jnp.pad(x, ((0, B_pad - B), (0, 0), (0, 0)))
    grid = (B_pad // TB,)

    # VMEM accounting with lane/sublane padding (double-buffered streams).
    needed = (2 * _padded_tile_bytes(TB, HW, C, x.dtype.itemsize)            # input
              + 2 * _round_up(C, 16) * _round_up(fc_dim, 128) * 2           # bf16 weight
              + 2 * 8 * _round_up(fc_dim, 128) * 4                          # offset
              + 2 * _round_up(TB, 8) * _round_up(fc_dim, 128) * 4)          # output
    vmem_limit = int(min(max(needed + needed // 4, 16 * 1024 * 1024), vmem_cap))
    vmem_limit = int(min(max(vmem_limit, needed + (1 << 20)), cap))

    kernel = functools.partial(iscnet_head_kernel, p=float(p))

    out = pl.pallas_call(
        kernel,
        out_shape=jax.ShapeDtypeStruct((B_pad, fc_dim), jnp.float32),
        grid_spec=pltpu.PrefetchScalarGridSpec(
            num_scalar_prefetch=0,
            grid=grid,
            in_specs=[
                pl.BlockSpec((TB, HW, C), lambda b: (b, 0, 0)),
                pl.BlockSpec((C, fc_dim), lambda b: (0, 0)),
                pl.BlockSpec((1, fc_dim), lambda b: (0, 0)),
            ],
            out_specs=pl.BlockSpec((TB, fc_dim), lambda b: (b, 0)),
        ),
        compiler_params=pltpu.CompilerParams(
            dimension_semantics=("parallel",),
            vmem_limit_bytes=vmem_limit),
    )(x, w_t, offset)

    return out[:B]


def iscnet_head_ref(x_bhwc, fc_weight, bn_gamma, bn_beta, bn_mean, bn_var, *, p=4.0):
    """Pure-JAX reference matching the PyTorch forward (eval mode)."""
    B, H, W, C = x_bhwc.shape
    x = x_bhwc.astype(jnp.float32)
    xp = jnp.power(jnp.maximum(x, GEM_EPS), p)
    pooled = jnp.mean(xp.reshape(B, H * W, C), axis=1)     # (B, C)
    g = jnp.power(pooled, 1.0 / p)
    y = g @ fc_weight.astype(jnp.float32).T
    y = (y - bn_mean) * jax.lax.rsqrt(bn_var + BN_EPS) * bn_gamma + bn_beta
    n = jnp.sqrt(jnp.sum(y * y, axis=1, keepdims=True))
    return y / jnp.maximum(n, NORM_EPS)


if __name__ == "__main__":
    # TODO(synk): the timm backbone itself is external to this kernel; the
    # kernel consumes its final feature map directly (channels-last).
    B, C, H, W = 2, 64, 8, 8
    FC_DIM = 256          # module default fc_dim
    EVAL_P = 4.0          # eval mode -> p = eval_p

    key = jax.random.PRNGKey(0)
    kx, kw = jax.random.split(key)

    # Synthetic backbone output feature map (channels-last).
    feat = jax.random.normal(kx, (B, H, W, C), dtype=jnp.float32)

    # Parameter init matching _init_params():
    #   fc.weight: xavier_normal_; bn: weight=1, bias=0, running stats (0, 1)
    xavier_std = (2.0 / (C + FC_DIM)) ** 0.5
    fc_weight = xavier_std * jax.random.normal(kw, (FC_DIM, C), dtype=jnp.float32)
    bn_gamma = jnp.ones((FC_DIM,), jnp.float32)
    bn_beta = jnp.zeros((FC_DIM,), jnp.float32)
    bn_mean = jnp.zeros((FC_DIM,), jnp.float32)
    bn_var = jnp.ones((FC_DIM,), jnp.float32)

    out = iscnet_head(feat, fc_weight, bn_gamma, bn_beta, bn_mean, bn_var,
                      p=EVAL_P)
    out = jax.block_until_ready(out)
    assert out.shape == (B, FC_DIM)

    ref = iscnet_head_ref(feat, fc_weight, bn_gamma, bn_beta, bn_mean, bn_var,
                          p=EVAL_P)
    # bf16 MXU matmul (f32 accumulation) -> tolerance loosened vs pure-f32 ref.
    assert jnp.allclose(out, ref, rtol=5e-3, atol=3e-3), "mismatch vs reference"

    print("KERNEL_OK")
</pallas_src>

<mosaic_0001>
module attributes {stable_mosaic.version = 11 : i64} {
  func.func @iscnet_head_kernel(%arg0: i32, %arg1: memref<2x64x64xf32, #tpu.memory_space<vmem>>, %arg2: memref<64x256xbf16, #tpu.memory_space<vmem>>, %arg3: memref<1x256xf32, #tpu.memory_space<vmem>>, %arg4: memref<2x256xf32, #tpu.memory_space<vmem>>) attributes {dimension_semantics = [#tpu.dimension_semantics<parallel>], iteration_bounds = array<i64: 1>, scalar_prefetch = 0 : i64, scratch_operands = 0 : i64, tpu.core_type = #tpu.core_type<tc>, window_params = [{transform_indices = @transform_0, window_bounds = array<i64: 2, 64, 64>}, {pipeline_mode = #tpu.pipeline_mode<synchronous>, transform_indices = @transform_1, window_bounds = array<i64: 64, 256>}, {pipeline_mode = #tpu.pipeline_mode<synchronous>, transform_indices = @transform_2, window_bounds = array<i64: 1, 256>}, {transform_indices = @transform_3, window_bounds = array<i64: 2, 256>}]} {
    %c0 = arith.constant 0 : index
    %c0_0 = arith.constant 0 : index
    %c0_1 = arith.constant 0 : index
    %0 = vector.load %arg1[%c0, %c0_0, %c0_1] : memref<2x64x64xf32, #tpu.memory_space<vmem>>, vector<2x64x64xf32>
    %cst = arith.constant 9.99999997E-7 : f32
    %1 = vector.broadcast %cst : f32 to vector<2x64x64xf32>
    %2 = arith.maximumf %0, %1 : vector<2x64x64xf32>
    %3 = arith.mulf %2, %2 : vector<2x64x64xf32>
    %4 = arith.mulf %3, %3 : vector<2x64x64xf32>
    %cst_2 = arith.constant dense<0.000000e+00> : vector<2x64xf32>
    %5 = vector.multi_reduction <add>, %4, %cst_2 [1] : vector<2x64x64xf32> to vector<2x64xf32>
    %cst_3 = arith.constant 6.400000e+01 : f32
    %6 = vector.broadcast %cst_3 : f32 to vector<2x64xf32>
    %7 = arith.divf %5, %6 : vector<2x64xf32>
    %8 = math.sqrt %7 : vector<2x64xf32>
    %9 = math.sqrt %8 : vector<2x64xf32>
    %10 = arith.truncf %9 : vector<2x64xf32> to vector<2x64xbf16>
    %c0_4 = arith.constant 0 : index
    %c0_5 = arith.constant 0 : index
    %11 = vector.load %arg2[%c0_4, %c0_5] : memref<64x256xbf16, #tpu.memory_space<vmem>>, vector<64x256xbf16>
    %cst_6 = arith.constant dense<0.000000e+00> : vector<2x256xf32>
    %12 = tpu.matmul %10, %11, %cst_6 {dimension_numbers = #tpu.dot_dimension_numbers<[1], [0], [0], [1], [0, 0, 1, 1], [], []>} : vector<2x64xbf16>, vector<64x256xbf16>, vector<2x256xf32> -> vector<2x256xf32>
    %c0_7 = arith.constant 0 : index
    %c0_8 = arith.constant 0 : index
    %13 = vector.load %arg3[%c0_7, %c0_8] : memref<1x256xf32, #tpu.memory_space<vmem>>, vector<1x256xf32>
    %14 = vector.broadcast %13 : vector<1x256xf32> to vector<2x256xf32>
    %15 = arith.addf %12, %14 : vector<2x256xf32>
    %16 = arith.mulf %15, %15 : vector<2x256xf32>
    %cst_9 = arith.constant dense<0.000000e+00> : vector<2xf32>
    %17 = vector.multi_reduction <add>, %16, %cst_9 [1] : vector<2x256xf32> to vector<2xf32>
    %18 = vector.shape_cast %17 : vector<2xf32> to vector<2x1xf32>
    %19 = math.sqrt %18 : vector<2x1xf32>
    %cst_10 = arith.constant 9.99999996E-13 : f32
    %20 = vector.broadcast %cst_10 : f32 to vector<2x1xf32>
    %21 = arith.maximumf %19, %20 : vector<2x1xf32>
    %22 = vector.broadcast %21 : vector<2x1xf32> to vector<2x256xf32>
    %23 = arith.divf %15, %22 : vector<2x256xf32>
    %c0_11 = arith.constant 0 : index
    %c0_12 = arith.constant 0 : index
    %24 = vector.load %arg4[%c0_11, %c0_12] : memref<2x256xf32, #tpu.memory_space<vmem>>, vector<2x256xf32>
    tpu.vector_store %arg4[%c0_11, %c0_12], %23 {strides = array<i32>} : memref<2x256xf32, #tpu.memory_space<vmem>>, vector<2x256xf32>,
    return
  }
  func.func @transform_0(%arg0: i32) -> (i32, i32, i32) {
    %c0_i32 = arith.constant 0 : i32
    %c0_i32_0 = arith.constant 0 : i32
    %c0_i32_1 = arith.constant 0 : i32
    return %arg0, %c0_i32, %c0_i32_0 : i32, i32, i32
  }
  func.func @transform_1(%arg0: i32) -> (i32, i32) {
    %c0_i32 = arith.constant 0 : i32
    %c0_i32_0 = arith.constant 0 : i32
    %c0_i32_1 = arith.constant 0 : i32
    return %c0_i32, %c0_i32_0 : i32, i32
  }
  func.func @transform_2(%arg0: i32) -> (i32, i32) {
    %c0_i32 = arith.constant 0 : i32
    %c0_i32_0 = arith.constant 0 : i32
    %c0_i32_1 = arith.constant 0 : i32
    return %c0_i32, %c0_i32_0 : i32, i32
  }
  func.func @transform_3(%arg0: i32) -> (i32, i32) {
    %c0_i32 = arith.constant 0 : i32
    %c0_i32_0 = arith.constant 0 : i32
    return %arg0, %c0_i32 : i32, i32
  }
}

</mosaic_0001>

<llo_original>
// kernel: tpu_custom_call.1
$region0: #{tpu_custom_call.1}
  #allocation0 [shape = 'u32[]', space=smem, size = 0x4, offset = 0x4, fixed_abs, tag = 'smem constant byte address 0x4 - core index']
  #allocation1 [shape = 'u32[144,128]{1,0:T(1,128)}', space=vmem, size = 0x12000, scoped, tag = 'internal scratch']
  %s0 = inlined_call_operand.hbm [shape: f32[2,64,64], index: 0, kind: input, shape index: {}]
  %s1 = inlined_call_operand.hbm [shape: bf16[64,256], index: 1, kind: input, shape index: {}]
  %s2 = inlined_call_operand.vmem [shape: f32[1,256], index: 2, kind: input, shape index: {}]
  %s3 = inlined_call_operand.hbm [shape: f32[2,256], index: 3, kind: output, shape index: {}]
  %s4 = sld [smem:[#allocation0]]
  $region30: #{tpu_custom_call.1} parent=0
    _
  %s6 = ssub.s32 1, %s4
  %s7 = scalar_select 0, %s6, %s4
  $region1: #{tpu_custom_call.1} parent=0
    #allocation2 [shape = 'u8[65536]{0}', space=vmem, size = 0x10000, scoped, tag = 'input window, operand 0, single buffered']
    #allocation3 [shape = 's32[1]{0}', space=sflag, size = 0x4, scoped, tag = 'scoped memory for tpu_custom_call.1']
    #allocation4 [shape = 's32[1]{0}', space=sflag, size = 0x4, scoped, tag = 'scoped memory for tpu_custom_call.1']
    #allocation5 [shape = 'u8[32768]{0}', space=vmem, size = 0x8000, scoped, tag = 'input window, operand 1, single buffered']
    #allocation6 [shape = 's32[1]{0}', space=sflag, size = 0x4, scoped, tag = 'scoped memory for tpu_custom_call.1']
    #allocation7 [shape = 'u8[2048]{0}', space=vmem, size = 0x800, scoped, tag = 'output window, operand 0, single buffered']
    %8 = vsyncpa [#allocation3], 0
    %9 = vsyncpa [#allocation6], 0
    %10 = vsyncpa [#allocation4], 0
    // Predicated region
    $region2: #{tpu_custom_call.1} parent=1 // pred_check
      _
    $region3: #{tpu_custom_call.1} parent=1 // pred_check_branch
      %12 = sbr.rel (0) target = $region5
    $region4: #{tpu_custom_call.1} parent=1 // pred_region
      %s14 = ssub.s32 2048, 2048
      %15 = vsyncadd [#allocation3], %s14
      %s16 = sshll.u32 [#allocation2], 4
      %s17 = int_to_ptr.vmem [resolvable:$true] %s16
      %22 = dma.hbm_to_vmem [thread:$0]  %s0, 2048, %s17, [#allocation3], 128, 128, 8
    $region5: #{tpu_custom_call.1} parent=1 // pred_fallthru
      _
    // Predicated region
    $region6: #{tpu_custom_call.1} parent=1 // pred_check
      _
    $region7: #{tpu_custom_call.1} parent=1 // pred_check_branch
      %24 = sbr.rel (0) target = $region9
    $region8: #{tpu_custom_call.1} parent=1 // pred_region
      %s26 = ssub.s32 1024, 1024
      %27 = vsyncadd [#allocation6], %s26
      %s28 = sshll.u32 [#allocation5], 4
      %s29 = int_to_ptr.vmem [resolvable:$true] %s28
      %34 = dma.hbm_to_vmem [thread:$0]  %s1, 1024, %s29, [#allocation6], 128, 128, 8
    $region9: #{tpu_custom_call.1} parent=1 // pred_fallthru
      _
    // Predicated region
    $region10: #{tpu_custom_call.1} parent=1 // pred_check
      _
    $region11: #{tpu_custom_call.1} parent=1 // pred_check_branch
      %36 = sbr.rel (0) target = $region13
    $region12: #{tpu_custom_call.1} parent=1 // pred_region
      _
    $region13: #{tpu_custom_call.1} parent=1 // pred_fallthru
      _
    // Predicated region
    $region14: #{tpu_custom_call.1} parent=1 // pred_check
      _
    $region15: #{tpu_custom_call.1} parent=1 // pred_check_branch
      %38 = sbr.rel (0) target = $region17
    $region16: #{tpu_custom_call.1} parent=1 // pred_region
      %39 = dma.done [#allocation3], 2048
    $region17: #{tpu_custom_call.1} parent=1 // pred_fallthru
      _
    // Predicated region
    $region18: #{tpu_custom_call.1} parent=1 // pred_check
      _
    $region19: #{tpu_custom_call.1} parent=1 // pred_check_branch
      %41 = sbr.rel (0) target = $region21
    $region20: #{tpu_custom_call.1} parent=1 // pred_region
      %42 = dma.done [#allocation6], 1024
    $region21: #{tpu_custom_call.1} parent=1 // pred_fallthru
      _
    %v44 = vld [vmem:[#allocation2] sm:$0xff]
    %v45 = vld [vmem:[#allocation2 + $0x8] sm:$0xff]
    %v46 = vld [vmem:[#allocation2 + $0x10] sm:$0xff]
    %v47 = vld [vmem:[#allocation2 + $0x18] sm:$0xff]
    %v48 = vld [vmem:[#allocation2 + $0x20] sm:$0xff]
    %v49 = vld [vmem:[#allocation2 + $0x28] sm:$0xff]
    %v50 = vld [vmem:[#allocation2 + $0x30] sm:$0xff]
    %v51 = vld [vmem:[#allocation2 + $0x38] sm:$0xff]
    %v52 = vld [vmem:[#allocation2 + $0x40] sm:$0xff]
    %v53 = vld [vmem:[#allocation2 + $0x48] sm:$0xff]
    %v54 = vld [vmem:[#allocation2 + $0x50] sm:$0xff]
    %v55 = vld [vmem:[#allocation2 + $0x58] sm:$0xff]
    %v56 = vld [vmem:[#allocation2 + $0x60] sm:$0xff]
    %v57 = vld [vmem:[#allocation2 + $0x68] sm:$0xff]
    %v58 = vld [vmem:[#allocation2 + $0x70] sm:$0xff]
    %v59 = vld [vmem:[#allocation2 + $0x78] sm:$0xff]
    %v60 = vmax.f32 %v44, 1e-06
    %v61 = vmax.f32 %v45, 1e-06
    %v62 = vmax.f32 %v46, 1e-06
    %v63 = vmax.f32 %v47, 1e-06
    %v64 = vmax.f32 %v48, 1e-06
    %v65 = vmax.f32 %v49, 1e-06
    %v66 = vmax.f32 %v50, 1e-06
    %v67 = vmax.f32 %v51, 1e-06
    %v68 = vmax.f32 %v52, 1e-06
    %v69 = vmax.f32 %v53, 1e-06
    %v70 = vmax.f32 %v54, 1e-06
    %v71 = vmax.f32 %v55, 1e-06
    %v72 = vmax.f32 %v56, 1e-06
    %v73 = vmax.f32 %v57, 1e-06
    %v74 = vmax.f32 %v58, 1e-06
    %v75 = vmax.f32 %v59, 1e-06
    %v76 = vmul.f32 %v60, %v60
    %v77 = vmul.f32 %v61, %v61
    %v78 = vmul.f32 %v62, %v62
    %v79 = vmul.f32 %v63, %v63
    %v80 = vmul.f32 %v64, %v64
    %v81 = vmul.f32 %v65, %v65
    %v82 = vmul.f32 %v66, %v66
    %v83 = vmul.f32 %v67, %v67
    %v84 = vmul.f32 %v68, %v68
    %v85 = vmul.f32 %v69, %v69
    %v86 = vmul.f32 %v70, %v70
    %v87 = vmul.f32 %v71, %v71
    %v88 = vmul.f32 %v72, %v72
    %v89 = vmul.f32 %v73, %v73
    %v90 = vmul.f32 %v74, %v74
    %v91 = vmul.f32 %v75, %v75
    %v92 = vmul.f32 %v76, %v76
    %v93 = vmul.f32 %v77, %v77
    %v94 = vmul.f32 %v78, %v78
    %v95 = vmul.f32 %v79, %v79
    %v96 = vmul.f32 %v80, %v80
    %v97 = vmul.f32 %v81, %v81
    %v98 = vmul.f32 %v82, %v82
    %v99 = vmul.f32 %v83, %v83
    %v100 = vmul.f32 %v84, %v84
    %v101 = vmul.f32 %v85, %v85
    %v102 = vmul.f32 %v86, %v86
    %v103 = vmul.f32 %v87, %v87
    %v104 = vmul.f32 %v88, %v88
    %v105 = vmul.f32 %v89, %v89
    %v106 = vmul.f32 %v90, %v90
    %v107 = vmul.f32 %v91, %v91
    %vm108 = vcmask 523264
    %v109 = vsel %vm108, %v92, 0.0
    %v110 = vsel %vm108, %v93, 0.0
    %v111 = vadd.f32 %v109, %v110
    %v112 = vsel %vm108, %v94, 0.0
    %v113 = vadd.f32 %v111, %v112
    %v114 = vsel %vm108, %v95, 0.0
    %v115 = vadd.f32 %v113, %v114
    %v116 = vsel %vm108, %v96, 0.0
    %v117 = vadd.f32 %v115, %v116
    %v118 = vsel %vm108, %v97, 0.0
    %v119 = vadd.f32 %v117, %v118
    %v120 = vsel %vm108, %v98, 0.0
    %v121 = vadd.f32 %v119, %v120
    %v122 = vsel %vm108, %v99, 0.0
    %v123 = vadd.f32 %v121, %v122
    %v124 = vrot.slane %v123, 4
    %v125 = vadd.f32 %v123, %v124
    %v126 = vrot.slane %v125, 2
    %v127 = vadd.f32 %v125, %v126
    %v128 = vrot.slane %v127, 1
    %v129 = vadd.f32 %v127, %v128
    %v130 = vsel %vm108, %v100, 0.0
    %v131 = vsel %vm108, %v101, 0.0
    %v132 = vadd.f32 %v130, %v131
    %v133 = vsel %vm108, %v102, 0.0
    %v134 = vadd.f32 %v132, %v133
    %v135 = vsel %vm108, %v103, 0.0
    %v136 = vadd.f32 %v134, %v135
    %v137 = vsel %vm108, %v104, 0.0
    %v138 = vadd.f32 %v136, %v137
    %v139 = vsel %vm108, %v105, 0.0
    %v140 = vadd.f32 %v138, %v139
    %v141 = vsel %vm108, %v106, 0.0
    %v142 = vadd.f32 %v140, %v141
    %v143 = vsel %vm108, %v107, 0.0
    %v144 = vadd.f32 %v142, %v143
    %v145 = vrot.slane %v144, 4
    %v146 = vadd.f32 %v144, %v145
    %v147 = vrot.slane %v146, 2
    %v148 = vadd.f32 %v146, %v147
    %v149 = vrot.slane %v148, 1
    %v150 = vadd.f32 %v148, %v149
    %v151 = vrcp.pop 64.0
    %v152 = vmul.f32 %v129, %v151
    %v153 = vmul.f32 %v150, %v151
    %v154 = vrsqrt.pop %v152
    %v155 = vmul.f32 %v152, %v154
    %vm156 = vcmp.eq.f32.partialorder %v152, inf
    %v157 = vsel %vm156, %v152, %v155
    %vm158 = vcmp.eq.f32.partialorder %v152, 0.0
    %v159 = vand.u32 %v152, 2147483648
    %v160 = vsel %vm158, %v159, %v157
    %v161 = vrsqrt.pop %v153
    %v162 = vmul.f32 %v153, %v161
    %vm163 = vcmp.eq.f32.partialorder %v153, inf
    %v164 = vsel %vm163, %v153, %v162
    %vm165 = vcmp.eq.f32.partialorder %v153, 0.0
    %v166 = vand.u32 %v153, 2147483648
    %v167 = vsel %vm165, %v166, %v164
    %v168 = vrsqrt.pop %v160
    %v169 = vmul.f32 %v160, %v168
    %vm170 = vcmp.eq.f32.partialorder %v160, inf
    %v171 = vsel %vm170, %v160, %v169
    %vm172 = vcmp.eq.f32.partialorder %v160, 0.0
    %v173 = vand.u32 %v160, 2147483648
    %v174 = vsel %vm172, %v173, %v171
    %v175 = vrsqrt.pop %v167
    %v176 = vmul.f32 %v167, %v175
    %vm177 = vcmp.eq.f32.partialorder %v167, inf
    %v178 = vsel %vm177, %v167, %v176
    %vm179 = vcmp.eq.f32.partialorder %v167, 0.0
    %v180 = vand.u32 %v167, 2147483648
    %v181 = vsel %vm179, %v180, %v178
    %v182 = vpack.c.bf16 %v174, %v174
    %v183 = vpack.c.bf16 %v181, %v181
    %v184 = vld [vmem:[#allocation5] sm:$0xff]
    %v185 = vld [vmem:[#allocation5 + $0x8] sm:$0xff]
    %v186 = vld [vmem:[#allocation5 + $0x10] sm:$0xff]
    %v187 = vld [vmem:[#allocation5 + $0x18] sm:$0xff]
    %v188 = vld [vmem:[#allocation5 + $0x20] sm:$0xff]
    %v189 = vld [vmem:[#allocation5 + $0x28] sm:$0xff]
    %v190 = vld [vmem:[#allocation5 + $0x30] sm:$0xff]
    %v191 = vld [vmem:[#allocation5 + $0x38] sm:$0xff]
    %v192 = vld [vmem:[%s2] sm:$0x3]
    %v194 = vlaneseq
    %v195 = vshrl.u32 %v194, 7
    %v196 = vsub.s32 0, %v195
    %v197 = vrot.slane %v192, %v196
    %v198 = vlaneseq
    %v199 = vshrl.u32 %v198, 7
    %v200 = vsub.s32 1, %v199
    %v201 = vrot.slane %v192, %v200
    %v206 = vunpack.c.l.b16 %v182
    %v207 = vunpack.c.l.b16 %v183
    %vm208 = vcmask 1041409
    %v209 = vsel %vm208, %v207, %v206
    %v210 = vpack.c.b16 %v209, %v209
    %v219 = vunpack.c.l.b16 %v184
    %v220 = vunpack.c.h.b16 %v184
    %v221 = vunpack.c.l.b16 %v185
    %v222 = vunpack.c.h.b16 %v185
    %v223 = vunpack.c.l.b16 %v186
    %v224 = vunpack.c.h.b16 %v186
    %v225 = vunpack.c.l.b16 %v187
    %v226 = vunpack.c.h.b16 %v187
    %v227 = vunpack.c.l.b16 %v188
    %v228 = vunpack.c.h.b16 %v188
    %v229 = vunpack.c.l.b16 %v189
    %v230 = vunpack.c.h.b16 %v189
    %v231 = vunpack.c.l.b16 %v190
    %v232 = vunpack.c.h.b16 %v190
    %v233 = vunpack.c.l.b16 %v191
    %v234 = vunpack.c.h.b16 %v191
    %v235 = vpack.c.b16 %v221, %v219
    %v236 = vpack.c.b16 %v222, %v220
    %v237 = vpack.c.b16 %v225, %v223
    %v238 = vpack.c.b16 %v226, %v224
    %v239 = vpack.c.b16 %v229, %v227
    %v240 = vpack.c.b16 %v230, %v228
    %v241 = vpack.c.b16 %v233, %v231
    %v242 = vpack.c.b16 %v234, %v232
    %v252 = vsel %vm108, %v210, 0
    %254 = vmatprep.subr.bf16.mxu0 0
    %255 = vmatpush1.bf16.msra.mxu0 0
    %256 = vmatprep.subr.bf16.mxu0 0
    %257 = vmatpush1.bf16.msra.mxu0 0
    %258 = vmatprep.subr.bf16.mxu0 0
    %259 = vmatpush1.bf16.msra.mxu0 0
    %260 = vmatprep.subr.bf16.mxu0 0
    %261 = vmatpush1.bf16.msra.mxu0 0
    %262 = vmatprep.subr.bf16.mxu0 %v242
    %263 = vmatpush1.bf16.msra.mxu0 %v241
    %264 = vmatprep.subr.bf16.mxu0 %v240
    %265 = vmatpush1.bf16.msra.mxu0 %v239
    %266 = vmatprep.subr.bf16.mxu0 %v238
    %267 = vmatpush1.bf16.msra.mxu0 %v237
    %268 = vmatprep.subr.bf16.mxu0 %v236
    %269 = vmatpush1.bf16.msra.mxu0 %v235
    %270 = vmatprep.subr.bf16.mxu0 0
    %271 = vmatpush2.bf16.msra.mxu0 0
    %272 = vmatprep.subr.bf16.mxu0 0
    %273 = vmatpush2.bf16.msra.mxu0 0
    %274 = vmatprep.subr.bf16.mxu0 0
    %275 = vmatpush2.bf16.msra.mxu0 0
    %276 = vmatprep.subr.bf16.mxu0 0
    %277 = vmatpush2.bf16.msra.mxu0 0
    %278 = vmatprep.subr.bf16.mxu0 0
    %279 = vmatpush2.bf16.msra.mxu0 0
    %280 = vmatprep.subr.bf16.mxu0 0
    %281 = vmatpush2.bf16.msra.mxu0 0
    %282 = vmatprep.subr.bf16.mxu0 0
    %283 = vmatpush2.bf16.msra.mxu0 0
    %284 = vmatprep.subr.bf16.mxu0 0
    %285 = vmatpush2.bf16.msra.mxu0 0
    %286 = vmatprep.mubr.bf16.mxu0 0
    %287 = vmatmul.mubr.bf16.gmra.mxu0 %v252
    %v288 = vpop.f32.mrf.mxu0
    %v289 = vadd.f32 %v197, %v288
    %v290 = vpop.f32.mrf.mxu0
    %v291 = vadd.f32 %v201, %v290
    %v292 = vpop.f32.mrf.mxu0
    %v293 = vpop.f32.mrf.mxu0
    %294 = vdwg.mxu0
    %v295 = vmul.f32 %v289, %v289
    %v296 = vmul.f32 %v291, %v291
    %vm297 = vcmask 1041408
    %v298 = vsel %vm297, %v295, 0.0
    %v299 = vsel %vm297, %v296, 0.0
    %v300 = vadd.f32 %v298, %v299
    %301 = vadd.xlane.f32.xlu0 %v300
    %v302 = vpop.xlane.xlu0 %301
    %v303 = vrsqrt.pop %v302
    %v304 = vmul.f32 %v302, %v303
    %vm305 = vcmp.eq.f32.partialorder %v302, inf
    %v306 = vsel %vm305, %v302, %v304
    %vm307 = vcmp.eq.f32.partialorder %v302, 0.0
    %v308 = vand.u32 %v302, 2147483648
    %v309 = vsel %vm307, %v308, %v306
    %v310 = vmax.f32 %v309, 1e-12
    %v311 = vrcp.pop %v310
    %v312 = vmul.f32 %v289, %v311
    %v313 = vmul.f32 %v291, %v311
    %v316 = vcombine.low %v312, %v313
    %v318 = vunpack.c.l.s4 1983009808
    %v319 = vunpack.c.0.s8 %v318
    %v320 = vlaneseq
    %v321 = vshrl.u32 %v320, 7
    %v322 = vsub.s32 %v319, %v321
    %v323 = vrot.slane %v316, %v322
    %325 = vst [vmem:[#allocation7] sm:$0xf] %v323
    // Predicated region
    $region22: #{tpu_custom_call.1} parent=1 // pred_check
      _
    $region23: #{tpu_custom_call.1} parent=1 // pred_check_branch
      %327 = sbr.rel (0) target = $region25
    $region24: #{tpu_custom_call.1} parent=1 // pred_region
      %s329 = ssub.s32 64, 64
      %330 = vsyncadd [#allocation4], %s329
      %s332 = sshll.u32 [#allocation7], 4
      %s333 = int_to_ptr.vmem [resolvable:$true] %s332
      %335 = dma.vmem_to_hbm [thread:$0]  %s333, 64, %s3, [#allocation4]
    $region25: #{tpu_custom_call.1} parent=1 // pred_fallthru
      _
    // Predicated region
    $region26: #{tpu_custom_call.1} parent=1 // pred_check
      _
    $region27: #{tpu_custom_call.1} parent=1 // pred_check_branch
      %337 = sbr.rel (0) target = $region29
    $region28: #{tpu_custom_call.1} parent=1 // pred_region
      %338 = dma.done [#allocation4], 64
    $region29: #{tpu_custom_call.1} parent=1 // pred_fallthru
      _
    %339 = vsyncpa [#allocation3], 1
    %340 = vsyncpa [#allocation6], 1
    %341 = vsyncpa [#allocation4], 1

</llo_original>
